<compile_context>
chip_gen: v7x
topology: tpu7x:2x2x1
jax: 0.10.0
libtpu: 0.0.40
codegen_flags: <defaults>
</compile_context>

<pallas_src>
import math

import jax
import jax.numpy as jnp
from jax import lax
from jax.experimental import pallas as pl
from jax.experimental.pallas import tpu as pltpu


# ------------------------- config (JambaSConfig analog) ------------------------
D_MODEL = 128                 # d_model (lane-dense: exactly 128 lanes)
NUM_HEADS = 8                 # num_attention_heads (config default)
HEAD_DIM = D_MODEL // NUM_HEADS
RMS_EPS = 1e-5
NEG_INF = -1e30
SM_SCALE = 1.0 / math.sqrt(HEAD_DIM)
VMEM_LIMIT = 64 * 1024 * 1024
ATTN_LAYER_IDX = 1            # odd layer index -> attention mixer (config default)


# -------------------- kernel 1: RMSNorm + fused QKV projection ------------------
def rmsnorm_qkv_kernel(x_ref, gamma_ref, wqkv_ref, q_ref, k_ref, v_ref):
    bb, ts, d = x_ref.shape
    x = x_ref[...].astype(jnp.float32)
    ms = jnp.mean(x * x, axis=-1, keepdims=True)
    xn = (x * lax.rsqrt(ms + RMS_EPS) * gamma_ref[...]).astype(jnp.bfloat16)

    # One (bb*ts, 128) @ (128, 384) MXU matmul for Q, K and V together.
    qkv = jnp.dot(xn.reshape(bb * ts, d), wqkv_ref[...],
                  preferred_element_type=jnp.float32)          # (bb*ts, 3D)
    q = qkv[:, 0 * d:1 * d] * SM_SCALE                          # fold 1/sqrt(hd)
    k = qkv[:, 1 * d:2 * d]
    v = qkv[:, 2 * d:3 * d]

    q_ref[...] = q.reshape(bb, ts, d).astype(q_ref.dtype)       # bf16, pre-scaled
    k_ref[...] = k.reshape(bb, ts, d).astype(k_ref.dtype)       # present_kv cache
    v_ref[...] = v.reshape(bb, ts, d).astype(v_ref.dtype)


# ------------- kernel 2: flash attention + output projection + residual ---------
def flash_attn_out_kernel(x_ref, q_ref, k_ref, v_ref, wo_ref, o_ref,
                          m_sc, l_sc, acc_sc):
    bb, tq, d = q_ref.shape
    tk = k_ref.shape[1]
    ki = pl.program_id(2)
    q0 = pl.program_id(1) * tq
    k0 = ki * tk

    @pl.when(ki == 0)
    def _init():
        m_sc[...] = jnp.full(m_sc.shape, NEG_INF, jnp.float32)
        l_sc[...] = jnp.zeros(l_sc.shape, jnp.float32)
        acc_sc[...] = jnp.zeros(acc_sc.shape, jnp.float32)

    # Skip kv blocks that lie entirely in the causal future of this q block.
    @pl.when(k0 <= q0 + tq - 1)
    def _compute():
        q = q_ref[...]                                   # bf16, already scaled
        k = k_ref[...].astype(jnp.bfloat16)
        v = v_ref[...].astype(jnp.bfloat16)
        row = lax.broadcasted_iota(jnp.int32, (tq, tk), 0) + q0
        col = lax.broadcasted_iota(jnp.int32, (tq, tk), 1) + k0
        causal = (col <= row)[None]                      # (1, tq, tk)

        for h in range(NUM_HEADS):                       # static unroll over heads
            lo = h * HEAD_DIM
            qh = q[:, :, lo:lo + HEAD_DIM]
            kh = k[:, :, lo:lo + HEAD_DIM]
            vh = v[:, :, lo:lo + HEAD_DIM]
            s = jnp.einsum("bqd,bkd->bqk", qh, kh,
                           preferred_element_type=jnp.float32)   # (bb, tq, tk)
            s = jnp.where(causal, s, NEG_INF)
            m_prev = m_sc[h]                                      # (bb, tq, 1)
            m_new = jnp.maximum(m_prev, jnp.max(s, axis=-1, keepdims=True))
            alpha = jnp.exp(m_prev - m_new)
            p = jnp.exp(s - m_new)
            l_sc[h] = alpha * l_sc[h] + jnp.sum(p, axis=-1, keepdims=True)
            acc_sc[h] = alpha * acc_sc[h] + jnp.einsum(
                "bqk,bkd->bqd", p.astype(jnp.bfloat16), vh,
                preferred_element_type=jnp.float32)
            m_sc[h] = m_new

    @pl.when(ki == pl.num_programs(2) - 1)
    def _finalize():
        # Deferred softmax normalization via EUP reciprocal; one lane-concat
        # per q block to rebuild the lane-dense (bb, tq, 128) context slab.
        ctx = jnp.concatenate(
            [acc_sc[h] * pl.reciprocal(l_sc[h], approx=True)
             for h in range(NUM_HEADS)], axis=-1)
        ctx = ctx.astype(jnp.bfloat16).reshape(bb * tq, d)
        attn = jnp.dot(ctx, wo_ref[...], preferred_element_type=jnp.float32)
        o_ref[...] = (x_ref[...].astype(jnp.float32)
                      + attn.reshape(bb, tq, d)).astype(o_ref.dtype)


# ---------------------------------- wrapper -------------------------------------
def jamba_block_attention(x, gamma, wq, wk, wv, wo, *, batch_block=1,
                          seq_block=None, q_block=None, kv_block=None):
    """x: (B, S, D) f32.  Weights stored (in, out), i.e. PyTorch W^T.
    Returns (out, (k_cache, v_cache)) like JambaBlock.forward for an attention
    layer with past_kv=None / attn_mask=None / eval mode.  present_kv is kept
    in the lane-dense (B, S, D) layout (consumer does the head split)."""
    B, S, D = x.shape
    assert D == D_MODEL
    bb = batch_block
    ts = seq_block if seq_block is not None else min(S, 512)
    tq = q_block if q_block is not None else min(S, 256)
    tk = kv_block if kv_block is not None else min(S, 256)
    assert B % bb == 0 and S % ts == 0 and S % tq == 0 and S % tk == 0
    assert ts == S or ts % 8 == 0
    assert tq == S or tq % 16 == 0          # q is stored bf16
    assert tk == S or tk % 8 == 0

    gamma2 = jnp.asarray(gamma, jnp.float32).reshape(1, D)
    wqkv = jnp.concatenate([wq, wk, wv], axis=1).astype(jnp.bfloat16)   # (D, 3D)
    wo_b = jnp.asarray(wo, jnp.bfloat16)

    # ---- kernel 1: RMSNorm + fused QKV projection ----
    q, k_cache, v_cache = pl.pallas_call(
        rmsnorm_qkv_kernel,
        out_shape=(jax.ShapeDtypeStruct((B, S, D), jnp.bfloat16),
                   jax.ShapeDtypeStruct((B, S, D), x.dtype),
                   jax.ShapeDtypeStruct((B, S, D), x.dtype)),
        grid=(B // bb, S // ts),
        in_specs=[pl.BlockSpec((bb, ts, D), lambda b, s: (b, s, 0)),
                  pl.BlockSpec((1, D), lambda b, s: (0, 0)),
                  pl.BlockSpec((D, 3 * D), lambda b, s: (0, 0))],
        out_specs=[pl.BlockSpec((bb, ts, D), lambda b, s: (b, s, 0)),
                   pl.BlockSpec((bb, ts, D), lambda b, s: (b, s, 0)),
                   pl.BlockSpec((bb, ts, D), lambda b, s: (b, s, 0))],
        compiler_params=pltpu.CompilerParams(
            dimension_semantics=("parallel", "parallel"),
            vmem_limit_bytes=VMEM_LIMIT),
    )(x, gamma2, wqkv)

    # ---- kernel 2: flash attention + out-proj + residual ----
    out = pl.pallas_call(
        flash_attn_out_kernel,
        out_shape=jax.ShapeDtypeStruct((B, S, D), x.dtype),
        grid=(B // bb, S // tq, S // tk),
        in_specs=[pl.BlockSpec((bb, tq, D), lambda b, qi, ki: (b, qi, 0)),  # residual x
                  pl.BlockSpec((bb, tq, D), lambda b, qi, ki: (b, qi, 0)),  # q
                  pl.BlockSpec((bb, tk, D), lambda b, qi, ki: (b, ki, 0)),  # k
                  pl.BlockSpec((bb, tk, D), lambda b, qi, ki: (b, ki, 0)),  # v
                  pl.BlockSpec((D, D), lambda b, qi, ki: (0, 0))],          # wo
        out_specs=pl.BlockSpec((bb, tq, D), lambda b, qi, ki: (b, qi, 0)),
        scratch_shapes=[pltpu.VMEM((NUM_HEADS, bb, tq, 1), jnp.float32),        # m
                        pltpu.VMEM((NUM_HEADS, bb, tq, 1), jnp.float32),        # l
                        pltpu.VMEM((NUM_HEADS, bb, tq, HEAD_DIM), jnp.float32)],  # acc
        compiler_params=pltpu.CompilerParams(
            dimension_semantics=("parallel", "parallel", "arbitrary"),
            vmem_limit_bytes=VMEM_LIMIT),
    )(x, q, k_cache, v_cache, wo_b)

    return out, (k_cache, v_cache)


# ------------------------------ pure-JAX reference -----------------------------
def reference_forward(x, gamma, wq, wk, wv, wo):
    """Independent reference of JambaBlock.forward (attention path, eval mode).
    present_kv is returned in the same lane-dense (B, S, D) layout as the kernel."""
    B, S, D = x.shape
    ms = jnp.mean(x * x, axis=-1, keepdims=True)
    xn = x * lax.rsqrt(ms + RMS_EPS) * gamma.reshape(1, 1, D)
    q = xn @ wq
    k = xn @ wk
    v = xn @ wv
    qh = q.reshape(B, S, NUM_HEADS, HEAD_DIM).transpose(0, 2, 1, 3)
    kh = k.reshape(B, S, NUM_HEADS, HEAD_DIM).transpose(0, 2, 1, 3)
    vh = v.reshape(B, S, NUM_HEADS, HEAD_DIM).transpose(0, 2, 1, 3)
    sc = jnp.einsum("bhqd,bhkd->bhqk", qh, kh) / math.sqrt(HEAD_DIM)
    mask = jnp.tril(jnp.ones((S, S), dtype=bool))
    sc = jnp.where(mask, sc, -jnp.inf)
    p = jax.nn.softmax(sc, axis=-1)
    ctx = jnp.einsum("bhqk,bhkd->bhqd", p, vh)
    attn = ctx.transpose(0, 2, 1, 3).reshape(B, S, D) @ wo
    return x + attn, (k, v)


# ------------------------------------ main --------------------------------------
if __name__ == "__main__":
    B, S = 2, 16
    key = jax.random.PRNGKey(0)
    kx, kg, kq, kk, kv, ko = jax.random.split(key, 6)

    x = jax.random.normal(kx, (B, S, D_MODEL), jnp.float32)
    gamma = 1.0 + 0.1 * jax.random.normal(kg, (D_MODEL,), jnp.float32)
    bound = 1.0 / math.sqrt(D_MODEL)          # nn.Linear default init bound
    wq = jax.random.uniform(kq, (D_MODEL, D_MODEL), jnp.float32, -bound, bound)
    wk = jax.random.uniform(kk, (D_MODEL, D_MODEL), jnp.float32, -bound, bound)
    wv = jax.random.uniform(kv, (D_MODEL, D_MODEL), jnp.float32, -bound, bound)
    wo = jax.random.uniform(ko, (D_MODEL, D_MODEL), jnp.float32, -bound, bound)

    assert ATTN_LAYER_IDX % 2 == 1            # attention layer per default config

    # kv_block=8 gives a 2-step online-softmax kv loop; batch axis gives grid>=2.
    out, (k_cache, v_cache) = jamba_block_attention(
        x, gamma, wq, wk, wv, wo,
        batch_block=1, seq_block=16, q_block=16, kv_block=8)
    out = jax.block_until_ready(out)

    ref_out, (ref_k, ref_v) = reference_forward(x, gamma, wq, wk, wv, wo)
    assert out.shape == (B, S, D_MODEL)
    assert k_cache.shape == (B, S, D_MODEL) and v_cache.shape == (B, S, D_MODEL)
    # bf16 MXU operands + approx reciprocal -> compare with a loose tolerance.
    assert jnp.allclose(out, ref_out, atol=5e-2, rtol=5e-2), \
        float(jnp.max(jnp.abs(out - ref_out)))
    assert jnp.allclose(k_cache, ref_k, atol=5e-2, rtol=5e-2)
    assert jnp.allclose(v_cache, ref_v, atol=5e-2, rtol=5e-2)
    print("KERNEL_OK")
</pallas_src>

<mosaic_0001>
module attributes {stable_mosaic.version = 11 : i64} {
  func.func @rmsnorm_qkv_kernel(%arg0: i32, %arg1: i32, %arg2: memref<1x16x128xf32, #tpu.memory_space<vmem>>, %arg3: memref<1x128xf32, #tpu.memory_space<vmem>>, %arg4: memref<128x384xbf16, #tpu.memory_space<vmem>>, %arg5: memref<1x16x128xbf16, #tpu.memory_space<vmem>>, %arg6: memref<1x16x128xf32, #tpu.memory_space<vmem>>, %arg7: memref<1x16x128xf32, #tpu.memory_space<vmem>>) attributes {dimension_semantics = [#tpu.dimension_semantics<parallel>, #tpu.dimension_semantics<parallel>], iteration_bounds = array<i64: 2, 1>, scalar_prefetch = 0 : i64, scratch_operands = 0 : i64, tpu.core_type = #tpu.core_type<tc>, window_params = [{transform_indices = @transform_0, window_bounds = array<i64: 1, 16, 128>}, {pipeline_mode = #tpu.pipeline_mode<synchronous>, transform_indices = @transform_1, window_bounds = array<i64: 1, 128>}, {pipeline_mode = #tpu.pipeline_mode<synchronous>, transform_indices = @transform_2, window_bounds = array<i64: 128, 384>}, {transform_indices = @transform_3, window_bounds = array<i64: 1, 16, 128>}, {transform_indices = @transform_4, window_bounds = array<i64: 1, 16, 128>}, {transform_indices = @transform_5, window_bounds = array<i64: 1, 16, 128>}]} {
    %c0 = arith.constant 0 : index
    %c0_0 = arith.constant 0 : index
    %c0_1 = arith.constant 0 : index
    %0 = vector.load %arg2[%c0, %c0_0, %c0_1] : memref<1x16x128xf32, #tpu.memory_space<vmem>>, vector<1x16x128xf32>
    %1 = arith.mulf %0, %0 : vector<1x16x128xf32>
    %cst = arith.constant dense<0.000000e+00> : vector<1x16xf32>
    %2 = vector.multi_reduction <add>, %1, %cst [2] : vector<1x16x128xf32> to vector<1x16xf32>
    %3 = vector.shape_cast %2 : vector<1x16xf32> to vector<1x16x1xf32>
    %cst_2 = arith.constant 1.280000e+02 : f32
    %4 = vector.broadcast %cst_2 : f32 to vector<1x16x1xf32>
    %5 = arith.divf %3, %4 : vector<1x16x1xf32>
    %cst_3 = arith.constant 9.99999974E-6 : f32
    %6 = vector.broadcast %cst_3 : f32 to vector<1x16x1xf32>
    %7 = arith.addf %5, %6 : vector<1x16x1xf32>
    %8 = math.rsqrt %7 : vector<1x16x1xf32>
    %9 = vector.broadcast %8 : vector<1x16x1xf32> to vector<1x16x128xf32>
    %10 = arith.mulf %0, %9 : vector<1x16x128xf32>
    %c0_4 = arith.constant 0 : index
    %c0_5 = arith.constant 0 : index
    %11 = vector.load %arg3[%c0_4, %c0_5] : memref<1x128xf32, #tpu.memory_space<vmem>>, vector<1x128xf32>
    %12 = vector.shape_cast %11 : vector<1x128xf32> to vector<1x1x128xf32>
    %13 = vector.broadcast %12 : vector<1x1x128xf32> to vector<1x16x128xf32>
    %14 = arith.mulf %10, %13 : vector<1x16x128xf32>
    %15 = arith.truncf %14 : vector<1x16x128xf32> to vector<1x16x128xbf16>
    %16 = vector.shape_cast %15 : vector<1x16x128xbf16> to vector<16x128xbf16>
    %c0_6 = arith.constant 0 : index
    %c0_7 = arith.constant 0 : index
    %17 = vector.load %arg4[%c0_6, %c0_7] : memref<128x384xbf16, #tpu.memory_space<vmem>>, vector<128x384xbf16>
    %cst_8 = arith.constant dense<0.000000e+00> : vector<16x384xf32>
    %18 = tpu.matmul %16, %17, %cst_8 {dimension_numbers = #tpu.dot_dimension_numbers<[1], [0], [0], [1], [0, 0, 1, 1], [], []>} : vector<16x128xbf16>, vector<128x384xbf16>, vector<16x384xf32> -> vector<16x384xf32>
    %19 = vector.extract_strided_slice %18 {offsets = [0, 0], sizes = [16, 128], strides = [1, 1]} : vector<16x384xf32> to vector<16x128xf32>
    %cst_9 = arith.constant 2.500000e-01 : f32
    %20 = vector.broadcast %cst_9 : f32 to vector<16x128xf32>
    %21 = arith.mulf %19, %20 : vector<16x128xf32>
    %22 = vector.extract_strided_slice %18 {offsets = [0, 128], sizes = [16, 128], strides = [1, 1]} : vector<16x384xf32> to vector<16x128xf32>
    %23 = vector.extract_strided_slice %18 {offsets = [0, 256], sizes = [16, 128], strides = [1, 1]} : vector<16x384xf32> to vector<16x128xf32>
    %24 = vector.shape_cast %21 : vector<16x128xf32> to vector<1x16x128xf32>
    %25 = arith.truncf %24 : vector<1x16x128xf32> to vector<1x16x128xbf16>
    %c0_10 = arith.constant 0 : index
    %c0_11 = arith.constant 0 : index
    %c0_12 = arith.constant 0 : index
    %26 = vector.load %arg5[%c0_10, %c0_11, %c0_12] : memref<1x16x128xbf16, #tpu.memory_space<vmem>>, vector<1x16x128xbf16>
    tpu.vector_store %arg5[%c0_10, %c0_11, %c0_12], %25 {strides = array<i32>} : memref<1x16x128xbf16, #tpu.memory_space<vmem>>, vector<1x16x128xbf16>,
    %27 = vector.shape_cast %22 : vector<16x128xf32> to vector<1x16x128xf32>
    %c0_13 = arith.constant 0 : index
    %c0_14 = arith.constant 0 : index
    %c0_15 = arith.constant 0 : index
    %28 = vector.load %arg6[%c0_13, %c0_14, %c0_15] : memref<1x16x128xf32, #tpu.memory_space<vmem>>, vector<1x16x128xf32>
    tpu.vector_store %arg6[%c0_13, %c0_14, %c0_15], %27 {strides = array<i32>} : memref<1x16x128xf32, #tpu.memory_space<vmem>>, vector<1x16x128xf32>,
    %29 = vector.shape_cast %23 : vector<16x128xf32> to vector<1x16x128xf32>
    %c0_16 = arith.constant 0 : index
    %c0_17 = arith.constant 0 : index
    %c0_18 = arith.constant 0 : index
    %30 = vector.load %arg7[%c0_16, %c0_17, %c0_18] : memref<1x16x128xf32, #tpu.memory_space<vmem>>, vector<1x16x128xf32>
    tpu.vector_store %arg7[%c0_16, %c0_17, %c0_18], %29 {strides = array<i32>} : memref<1x16x128xf32, #tpu.memory_space<vmem>>, vector<1x16x128xf32>,
    return
  }
  func.func @transform_0(%arg0: i32, %arg1: i32) -> (i32, i32, i32) {
    %c0_i32 = arith.constant 0 : i32
    %c0_i32_0 = arith.constant 0 : i32
    return %arg0, %arg1, %c0_i32 : i32, i32, i32
  }
  func.func @transform_1(%arg0: i32, %arg1: i32) -> (i32, i32) {
    %c0_i32 = arith.constant 0 : i32
    %c0_i32_0 = arith.constant 0 : i32
    %c0_i32_1 = arith.constant 0 : i32
    return %c0_i32, %c0_i32_0 : i32, i32
  }
  func.func @transform_2(%arg0: i32, %arg1: i32) -> (i32, i32) {
    %c0_i32 = arith.constant 0 : i32
    %c0_i32_0 = arith.constant 0 : i32
    %c0_i32_1 = arith.constant 0 : i32
    return %c0_i32, %c0_i32_0 : i32, i32
  }
  func.func @transform_3(%arg0: i32, %arg1: i32) -> (i32, i32, i32) {
    %c0_i32 = arith.constant 0 : i32
    %c0_i32_0 = arith.constant 0 : i32
    return %arg0, %arg1, %c0_i32 : i32, i32, i32
  }
  func.func @transform_4(%arg0: i32, %arg1: i32) -> (i32, i32, i32) {
    %c0_i32 = arith.constant 0 : i32
    %c0_i32_0 = arith.constant 0 : i32
    return %arg0, %arg1, %c0_i32 : i32, i32, i32
  }
  func.func @transform_5(%arg0: i32, %arg1: i32) -> (i32, i32, i32) {
    %c0_i32 = arith.constant 0 : i32
    %c0_i32_0 = arith.constant 0 : i32
    return %arg0, %arg1, %c0_i32 : i32, i32, i32
  }
}

</mosaic_0001>

<llo_original>
// kernel: tpu_custom_call.1
$region0: #{tpu_custom_call.1}
  #allocation0 [shape = 'u32[]', space=smem, size = 0x4, offset = 0x4, fixed_abs, tag = 'smem constant byte address 0x4 - core index']
  #allocation1 [shape = 'u32[144,128]{1,0:T(1,128)}', space=vmem, size = 0x12000, scoped, tag = 'internal scratch']
  %s0 = inlined_call_operand.hbm [shape: f32[2,16,128], index: 0, kind: input, shape index: {}]
  %s1 = inlined_call_operand.hbm [shape: f32[1,128], index: 1, kind: input, shape index: {}]
  %s2 = inlined_call_operand.hbm [shape: bf16[128,384], index: 2, kind: input, shape index: {}]
  %s3 = inlined_call_operand.hbm [shape: bf16[2,16,128], index: 3, kind: output, shape index: {0}]
  %s4 = inlined_call_operand.hbm [shape: f32[2,16,128], index: 4, kind: output, shape index: {1}]
  %s5 = inlined_call_operand.hbm [shape: f32[2,16,128], index: 5, kind: output, shape index: {2}]
  %6 = xla_tuple %s3, %s4, %s5
  %s7 = sld [smem:[#allocation0]]
  $region73: #{tpu_custom_call.1} parent=0
    _
  %s9 = ssub.s32 1, %s7
  %s10 = scalar_select 0, %s9, %s7
  $region1: #{tpu_custom_call.1} parent=0
    #allocation2 [shape = 'u8[16384]{0}', space=vmem, size = 0x4000, scoped, tag = 'input window, operand 0']
    #allocation3 [shape = 's32[2]{0}', space=sflag, size = 0x8, scoped, tag = 'scoped memory for tpu_custom_call.1']
    #allocation4 [shape = 's32[2]{0}', space=sflag, size = 0x8, scoped, tag = 'scoped memory for tpu_custom_call.1']
    #allocation5 [shape = 'u8[512]{0}', space=vmem, size = 0x400, scoped, tag = 'input window, operand 1, single buffered']
    #allocation6 [shape = 's32[1]{0}', space=sflag, size = 0x4, scoped, tag = 'scoped memory for tpu_custom_call.1']
    #allocation7 [shape = 'u8[98304]{0}', space=vmem, size = 0x18000, scoped, tag = 'input window, operand 2, single buffered']
    #allocation8 [shape = 'u8[8192]{0}', space=vmem, size = 0x2000, scoped, tag = 'output window, operand 0']
    #allocation9 [shape = 'u8[16384]{0}', space=vmem, size = 0x4000, scoped, tag = 'output window, operand 1']
    #allocation10 [shape = 's32[2]{0}', space=sflag, size = 0x8, scoped, tag = 'scoped memory for tpu_custom_call.1']
    #allocation11 [shape = 'u8[16384]{0}', space=vmem, size = 0x4000, scoped, tag = 'output window, operand 2']
    %11 = vsyncpa [#allocation3], 0
    %s12 = scalar_lea.sflag [#allocation3], 1
    %13 = vsyncpa %s12, 0
    %14 = vsyncpa [#allocation6], 0
    %15 = vsyncpa [#allocation4], 0
    %s16 = scalar_lea.sflag [#allocation4], 1
    %17 = vsyncpa %s16, 0
    %18 = vsyncpa [#allocation10], 0
    %s19 = scalar_lea.sflag [#allocation10], 1
    %20 = vsyncpa %s19, 0
    loop: start=0, step=1, limit=4
    $region2: #{tpu_custom_call.1} parent=1 // loop_pre_header
      _
    $region3: #{tpu_custom_call.1} parent=1 // loop_header
      %s22 = sphi 0, %s26
      %p23 = scmp.ge.s32.totalorder %s22, 4
      %s29 = sphi 0, %s41
      %s30 = sphi 0, %s37
      %s31 = sphi 0, %s29
      %s32 = sphi 0, %s30
      %s33 = sphi 0, %s31
      %s34 = sphi 0, %s32
      %s46 = sphi 0, %s48
      %s49 = sphi 0, %s46
      %s50 = sphi 0, %s49
      %s66 = sphi 0, %s50
      %s70 = sphi 0, %s70
      %s72 = sphi 0, %s70
      %s73 = sphi 0, %s72
      %s87 = sphi 0, %s73
      %s91 = sphi 0, %s91
      %s93 = sphi 0, %s91
      %s94 = sphi 0, %s93
      %s108 = sphi 0, %s94
      %s116 = sphi 0, %s118
      %s119 = sphi 0, %s116
      %s120 = sphi 0, %s119
      %s136 = sphi 0, %s120
      %s144 = sphi 0, %s146
      %s147 = sphi 0, %s144
      %s148 = sphi 0, %s147
      %s164 = sphi 0, %s148
      %s172 = sphi 0, %s174
      %s175 = sphi 0, %s172
      %s176 = sphi 0, %s175
      %s192 = sphi 0, %s176
    $region4: #{tpu_custom_call.1} parent=1 // loop_header_branch
      %25 = sbr.rel (%p23) target = $region8
    $region5: #{tpu_custom_call.1} parent=1 // loop_body
      %s27 = ssub.s32 %s22, 1
      %s28 = ssub.s32 %s22, 2
      %s35 = sadd.s32 1, %s30
      %p36 = scmp.ge.s32.totalorder %s35, 1
      %s37 = scalar_select %p36, 0, %s35
      %s38 = sadd.s32 1, %s29
      %s39 = scalar_select %p36, %s38, %s29
      %p40 = scmp.ge.s32.totalorder %s39, 2
      %s41 = scalar_select %p40, 0, %s39
      %s42 = ssub.s32 %s29, %s41
      %s43 = ssub.s32 %s30, %s37
      %s44 = sor.u32 %s42, %s43
      %p45 = scmp.eq.s32.totalorder %s44, 0
      %s47 = sadd.s32 %s46, 1
      %s48 = scalar_select %p45, %s46, %s47
      %p51 = pneg %p45
      %p52 = scmp.eq.s32.totalorder %s22, 1
      %p53 = por %p51, %p52
      %p54 = scmp.ne.s32.totalorder %s46, %s49
      %p55 = scmp.eq.s32.totalorder %s22, 0
      %p56 = por %p54, %p55
      %p57 = scmp.ne.s32.totalorder %s46, %s49
      %p58 = scmp.eq.s32.totalorder %s27, 1
      %p59 = por %p57, %p58
      %p60 = scmp.ne.s32.totalorder %s49, %s50
      %p61 = scmp.eq.s32.totalorder %s27, 0
      %p62 = por %p60, %p61
      %p63 = scmp.ne.s32.totalorder %s49, %s50
      %p64 = scmp.eq.s32.totalorder %s28, 1
      %p65 = por %p63, %p64
      %p67 = scmp.ne.s32.totalorder %s50, %s66
      %p68 = scmp.eq.s32.totalorder %s28, 0
      %p69 = por %p67, %p68
      %s71 = sadd.s32 %s70, 1
      %p74 = scmp.eq.s32.totalorder %s22, 1
      %p75 = scmp.ne.s32.totalorder %s70, %s72
      %p76 = scmp.eq.s32.totalorder %s22, 0
      %p77 = por %p75, %p76
      %p78 = scmp.ne.s32.totalorder %s70, %s72
      %p79 = scmp.eq.s32.totalorder %s27, 1
      %p80 = por %p78, %p79
      %p81 = scmp.ne.s32.totalorder %s72, %s73
      %p82 = scmp.eq.s32.totalorder %s27, 0
      %p83 = por %p81, %p82
      %p84 = scmp.ne.s32.totalorder %s72, %s73
      %p85 = scmp.eq.s32.totalorder %s28, 1
      %p86 = por %p84, %p85
      %p88 = scmp.ne.s32.totalorder %s73, %s87
      %p89 = scmp.eq.s32.totalorder %s28, 0
      %p90 = por %p88, %p89
      %s92 = sadd.s32 %s91, 1
      %p95 = scmp.eq.s32.totalorder %s22, 1
      %p96 = scmp.ne.s32.totalorder %s91, %s93
      %p97 = scmp.eq.s32.totalorder %s22, 0
      %p98 = por %p96, %p97
      %p99 = scmp.ne.s32.totalorder %s91, %s93
      %p100 = scmp.eq.s32.totalorder %s27, 1
      %p101 = por %p99, %p100
      %p102 = scmp.ne.s32.totalorder %s93, %s94
      %p103 = scmp.eq.s32.totalorder %s27, 0
      %p104 = por %p102, %p103
      %p105 = scmp.ne.s32.totalorder %s93, %s94
      %p106 = scmp.eq.s32.totalorder %s28, 1
      %p107 = por %p105, %p106
      %p109 = scmp.ne.s32.totalorder %s94, %s108
      %p110 = scmp.eq.s32.totalorder %s28, 0
      %p111 = por %p109, %p110
      %s112 = ssub.s32 %s29, %s41
      %s113 = ssub.s32 %s30, %s37
      %s114 = sor.u32 %s112, %s113
      %p115 = scmp.eq.s32.totalorder %s114, 0
      %s117 = sadd.s32 %s116, 1
      %s118 = scalar_select %p115, %s116, %s117
      %p121 = pneg %p115
      %p122 = scmp.eq.s32.totalorder %s22, 1
      %p123 = por %p121, %p122
      %p124 = scmp.ne.s32.totalorder %s116, %s119
      %p125 = scmp.eq.s32.totalorder %s22, 0
      %p126 = por %p124, %p125
      %p127 = scmp.ne.s32.totalorder %s116, %s119
      %p128 = scmp.eq.s32.totalorder %s27, 1
      %p129 = por %p127, %p128
      %p130 = scmp.ne.s32.totalorder %s119, %s120
      %p131 = scmp.eq.s32.totalorder %s27, 0
      %p132 = por %p130, %p131
      %p133 = scmp.ne.s32.totalorder %s119, %s120
      %p134 = scmp.eq.s32.totalorder %s28, 1
      %p135 = por %p133, %p134
      %p137 = scmp.ne.s32.totalorder %s120, %s136
      %p138 = scmp.eq.s32.totalorder %s28, 0
      %p139 = por %p137, %p138
      %s140 = ssub.s32 %s29, %s41
      %s141 = ssub.s32 %s30, %s37
      %s142 = sor.u32 %s140, %s141
      %p143 = scmp.eq.s32.totalorder %s142, 0
      %s145 = sadd.s32 %s144, 1
      %s146 = scalar_select %p143, %s144, %s145
      %p149 = pneg %p143
      %p150 = scmp.eq.s32.totalorder %s22, 1
      %p151 = por %p149, %p150
      %p152 = scmp.ne.s32.totalorder %s144, %s147
      %p153 = scmp.eq.s32.totalorder %s22, 0
      %p154 = por %p152, %p153
      %p155 = scmp.ne.s32.totalorder %s144, %s147
      %p156 = scmp.eq.s32.totalorder %s27, 1
      %p157 = por %p155, %p156
      %p158 = scmp.ne.s32.totalorder %s147, %s148
      %p159 = scmp.eq.s32.totalorder %s27, 0
      %p160 = por %p158, %p159
      %p161 = scmp.ne.s32.totalorder %s147, %s148
      %p162 = scmp.eq.s32.totalorder %s28, 1
      %p163 = por %p161, %p162
      %p165 = scmp.ne.s32.totalorder %s148, %s164
      %p166 = scmp.eq.s32.totalorder %s28, 0
      %p167 = por %p165, %p166
      %s168 = ssub.s32 %s29, %s41
      %s169 = ssub.s32 %s30, %s37
      %s170 = sor.u32 %s168, %s169
      %p171 = scmp.eq.s32.totalorder %s170, 0
      %s173 = sadd.s32 %s172, 1
      %s174 = scalar_select %p171, %s172, %s173
      %p177 = pneg %p171
      %p178 = scmp.eq.s32.totalorder %s22, 1
      %p179 = por %p177, %p178
      %p180 = scmp.ne.s32.totalorder %s172, %s175
      %p181 = scmp.eq.s32.totalorder %s22, 0
      %p182 = por %p180, %p181
      %p183 = scmp.ne.s32.totalorder %s172, %s175
      %p184 = scmp.eq.s32.totalorder %s27, 1
      %p185 = por %p183, %p184
      %p186 = scmp.ne.s32.totalorder %s175, %s176
      %p187 = scmp.eq.s32.totalorder %s27, 0
      %p188 = por %p186, %p187
      %p189 = scmp.ne.s32.totalorder %s175, %s176
      %p190 = scmp.eq.s32.totalorder %s28, 1
      %p191 = por %p189, %p190
      %p193 = scmp.ne.s32.totalorder %s176, %s192
      %p194 = scmp.eq.s32.totalorder %s28, 0
      %p195 = por %p193, %p194
      %p196 = scmp.le.s32.totalorder 1, %s22
      %p197 = scmp.lt.s32.totalorder %s22, 3
      %p198 = pnand %p196, %p197
      %p199 = pneg %p198
      // Predicated region
      $region9: #{tpu_custom_call.1} parent=5 // pred_check
        _
      $region10: #{tpu_custom_call.1} parent=5 // pred_check_branch
        %201 = sbr.rel (%p198) target = $region12
      $region11: #{tpu_custom_call.1} parent=5 // pred_region
        %s202 = ssub.s32 %s22, 1
        // Predicated region
        $region13: #{tpu_custom_call.1} parent=11 // pred_check
          %p203 = pneg %p83
        $region14: #{tpu_custom_call.1} parent=11 // pred_check_branch
          %205 = sbr.rel (%p203) target = $region16
        $region15: #{tpu_custom_call.1} parent=11 // pred_region
          %s207 = ssub.s32 16, 16
          %208 = vsyncadd [#allocation6], %s207
          %s210 = sshll.u32 [#allocation5], 4
          %s211 = int_to_ptr.vmem [resolvable:$true] %s210
          %213 = dma.hbm_to_vmem [thread:$0]  %s1, 16, %s211, [#allocation6]
        $region16: #{tpu_custom_call.1} parent=11 // pred_fallthru
          _
        // Predicated region
        $region17: #{tpu_custom_call.1} parent=11 // pred_check
          %p214 = pneg %p104
        $region18: #{tpu_custom_call.1} parent=11 // pred_check_branch
          %216 = sbr.rel (%p214) target = $region20
        $region19: #{tpu_custom_call.1} parent=11 // pred_region
          %s218 = ssub.s32 3072, 3072
          %219 = vsyncadd [#allocation6], %s218
          %s220 = sshll.u32 [#allocation7], 4
          %s221 = int_to_ptr.vmem [resolvable:$true] %s220
          %226 = dma.hbm_to_vmem [thread:$0]  %s2, 3072, %s221, [#allocation6], 192, 192, 12
        $region20: #{tpu_custom_call.1} parent=11 // pred_fallthru
          _
      $region12: #{tpu_custom_call.1} parent=5 // pred_fallthru
        _
      %p227 = scmp.lt.s32.totalorder %s22, 2
      // Predicated region
      $region21: #{tpu_custom_call.1} parent=5 // pred_check
        %p228 = pneg %p227
      $region22: #{tpu_custom_call.1} parent=5 // pred_check_branch
        %230 = sbr.rel (%p228) target = $region24
      $region23: #{tpu_custom_call.1} parent=5 // pred_region
        // Predicated region
        $region25: #{tpu_custom_call.1} parent=23 // pred_check
          %p231 = pneg %p56
        $region26: #{tpu_custom_call.1} parent=23 // pred_check_branch
          %233 = sbr.rel (%p231) target = $region28
        $region27: #{tpu_custom_call.1} parent=23 // pred_region
          %s234 = sand.u32 %s46, 1
          %s235 = scalar_lea.sflag [#allocation3], %s234
          %s236 = sand.u32 %s46, 1
          %s237 = smul.addr %s236, 16
          %s238 = scalar_lea.vmem [#allocation2], %s237
          %s239 = smul.u32 2, %s30
          %s241 = ssub.s32 256, 256
          %242 = vsyncadd %s235, %s241
          %s243 = smul.addr %s29, 2
          %s244 = sadd.s32 %s239, %s243
          %s245 = smul.addr %s244, 128
          %s246 = scalar_lea.hbm %s0, %s245
          %s247 = sshll.u32 %s238, 4
          %s248 = int_to_ptr.vmem [resolvable:$true] %s247
          %253 = dma.hbm_to_vmem [thread:$0]  %s246, 256, %s248, %s235, 128, 128, 8
        $region28: #{tpu_custom_call.1} parent=23 // pred_fallthru
          _
      $region24: #{tpu_custom_call.1} parent=5 // pred_fallthru
        _
      %p254 = scmp.le.s32.totalorder 1, %s22
      %p255 = scmp.lt.s32.totalorder %s22, 3
      %p256 = pnand %p254, %p255
      %p257 = pneg %p256
      // Predicated region
      $region29: #{tpu_custom_call.1} parent=5 // pred_check
        _
      $region30: #{tpu_custom_call.1} parent=5 // pred_check_branch
        %259 = sbr.rel (%p256) target = $region32
      $region31: #{tpu_custom_call.1} parent=5 // pred_region
        %s260 = ssub.s32 %s22, 1
        %s261 = sand.u32 %s49, 1
        %s262 = scalar_lea.sflag [#allocation3], %s261
        %s263 = sand.u32 %s49, 1
        %s264 = smul.addr %s263, 16
        %s265 = scalar_lea.vmem [#allocation2], %s264
        // Predicated region
        $region33: #{tpu_custom_call.1} parent=31 // pred_check
          %p266 = pneg %p62
        $region34: #{tpu_custom_call.1} parent=31 // pred_check_branch
          %268 = sbr.rel (%p266) target = $region36
        $region35: #{tpu_custom_call.1} parent=31 // pred_region
          %269 = dma.done %s262, 256
        $region36: #{tpu_custom_call.1} parent=31 // pred_fallthru
          _
        // Predicated region
        $region37: #{tpu_custom_call.1} parent=31 // pred_check
          %p270 = pneg %p83
        $region38: #{tpu_custom_call.1} parent=31 // pred_check_branch
          %272 = sbr.rel (%p270) target = $region40
        $region39: #{tpu_custom_call.1} parent=31 // pred_region
          %273 = dma.done [#allocation6], 16
        $region40: #{tpu_custom_call.1} parent=31 // pred_fallthru
          _
        // Predicated region
        $region41: #{tpu_custom_call.1} parent=31 // pred_check
          %p274 = pneg %p104
        $region42: #{tpu_custom_call.1} parent=31 // pred_check_branch
          %276 = sbr.rel (%p274) target = $region44
        $region43: #{tpu_custom_call.1} parent=31 // pred_region
          %277 = dma.done [#allocation6], 3072
        $region44: #{tpu_custom_call.1} parent=31 // pred_fallthru
          _
        %s278 = sand.u32 %s49, 1
        %s279 = scalar_lea.sflag [#allocation3], %s278
        %s280 = sand.u32 %s49, 1
        %s281 = smul.addr %s280, 16
        %s282 = scalar_lea.vmem [#allocation2], %s281
        %p283 = pneg %p62
        %p284 = pneg %p59
        %p285 = pneg %p83
        %p286 = pneg %p80
        %p287 = pneg %p104
        %p288 = pneg %p101
        %p289 = pneg %p132
        %p290 = pneg %p129
        %s291 = sand.u32 %s119, 1
        %s292 = scalar_lea.sflag [#allocation4], %s291
        %s293 = sand.u32 %s119, 1
        %s294 = smul.addr %s293, 8
        %s295 = scalar_lea.vmem [#allocation8], %s294
        %p296 = pneg %p160
        %p297 = pneg %p157
        %s298 = sand.u32 %s27, 1
        %s299 = scalar_lea.sflag [#allocation10], %s298
        %s300 = sand.u32 %s147, 1
        %s301 = smul.addr %s300, 16
        %s302 = scalar_lea.vmem [#allocation9], %s301
        %p303 = pneg %p188
        %p304 = pneg %p185
        %s305 = sand.u32 %s27, 1
        %s306 = scalar_lea.sflag [#allocation10], %s305
        %s307 = sand.u32 %s175, 1
        %s308 = smul.addr %s307, 16
        %s309 = scalar_lea.vmem [#allocation11], %s308
        %s310 = smul.u32 2, %s32
        %s311 = smul.u32 2, %s32
        %s312 = smul.u32 2, %s32
        %s313 = smul.u32 2, %s32
        %v315 = vld [vmem:[%s265] sm:$0xff]
        %v316 = vld [vmem:[%s265 + $0x8] sm:$0xff]
        %v317 = vmul.f32 %v315, %v315
        %v318 = vmul.f32 %v316, %v316
        %319 = vadd.xlane.f32.xlu0 %v317
        %v320 = vpop.xlane.xlu0 %319
        %321 = vadd.xlane.f32.xlu0 %v318
        %v322 = vpop.xlane.xlu0 %321
        %v323 = vrcp.pop 128.0
        %v324 = vmul.f32 %v320, %v323
        %v325 = vmul.f32 %v322, %v323
        %v326 = vadd.f32 %v324, 1e-05
        %v327 = vadd.f32 %v325, 1e-05
        %v328 = vrsqrt.pop %v326
        %v329 = vrsqrt.pop %v327
        %v330 = vmul.f32 %v315, %v328
        %v331 = vmul.f32 %v316, %v329
        %v332 = vld [vmem:[#allocation5] sm:$0x1]
        %v334 = vlaneseq
        %v335 = vshrl.u32 %v334, 7
        %v336 = vsub.s32 0, %v335
        %v337 = vrot.slane %v332, %v336
        %v339 = vmul.f32 %v330, %v337
        %v340 = vmul.f32 %v331, %v337
        %v341 = vpack.c.bf16 %v340, %v339
        %v342 = vld [vmem:[#allocation7] sm:$0xff]
        %v343 = vld [vmem:[#allocation7 + $0x8] sm:$0xf]
        %v344 = vld [vmem:[#allocation7 + $0xc] sm:$0xff]
        %v345 = vld [vmem:[#allocation7 + $0x14] sm:$0xf]
        %v346 = vld [vmem:[#allocation7 + $0x18] sm:$0xff]
        %v347 = vld [vmem:[#allocation7 + $0x20] sm:$0xf]
        %v348 = vld [vmem:[#allocation7 + $0x24] sm:$0xff]
        %v349 = vld [vmem:[#allocation7 + $0x2c] sm:$0xf]
        %v350 = vld [vmem:[#allocation7 + $0x30] sm:$0xff]
        %v351 = vld [vmem:[#allocation7 + $0x38] sm:$0xf]
        %v352 = vld [vmem:[#allocation7 + $0x3c] sm:$0xff]
        %v353 = vld [vmem:[#allocation7 + $0x44] sm:$0xf]
        %v354 = vld [vmem:[#allocation7 + $0x48] sm:$0xff]
        %v355 = vld [vmem:[#allocation7 + $0x50] sm:$0xf]
        %v356 = vld [vmem:[#allocation7 + $0x54] sm:$0xff]
        %v357 = vld [vmem:[#allocation7 + $0x5c] sm:$0xf]
        %v358 = vld [vmem:[#allocation7 + $0x60] sm:$0xff]
        %v359 = vld [vmem:[#allocation7 + $0x68] sm:$0xf]
        %v360 = vld [vmem:[#allocation7 + $0x6c] sm:$0xff]
        %v361 = vld [vmem:[#allocation7 + $0x74] sm:$0xf]
        %v362 = vld [vmem:[#allocation7 + $0x78] sm:$0xff]
        %v363 = vld [vmem:[#allocation7 + $0x80] sm:$0xf]
        %v364 = vld [vmem:[#allocation7 + $0x84] sm:$0xff]
        %v365 = vld [vmem:[#allocation7 + $0x8c] sm:$0xf]
        %v366 = vld [vmem:[#allocation7 + $0x90] sm:$0xff]
        %v367 = vld [vmem:[#allocation7 + $0x98] sm:$0xf]
        %v368 = vld [vmem:[#allocation7 + $0x9c] sm:$0xff]
        %v369 = vld [vmem:[#allocation7 + $0xa4] sm:$0xf]
        %v370 = vld [vmem:[#allocation7 + $0xa8] sm:$0xff]
        %v371 = vld [vmem:[#allocation7 + $0xb0] sm:$0xf]
        %v372 = vld [vmem:[#allocation7 + $0xb4] sm:$0xff]
        %v373 = vld [vmem:[#allocation7 + $0xbc] sm:$0xf]
        %v406 = vunpack.c.l.b16 %v342
        %v407 = vunpack.c.h.b16 %v342
        %v408 = vunpack.c.l.b16 %v343
        %v409 = vunpack.c.l.b16 %v344
        %v410 = vunpack.c.h.b16 %v344
        %v411 = vunpack.c.l.b16 %v345
        %v412 = vunpack.c.l.b16 %v346
        %v413 = vunpack.c.h.b16 %v346
        %v414 = vunpack.c.l.b16 %v347
        %v415 = vunpack.c.l.b16 %v348
        %v416 = vunpack.c.h.b16 %v348
        %v417 = vunpack.c.l.b16 %v349
        %v418 = vunpack.c.l.b16 %v350
        %v419 = vunpack.c.h.b16 %v350
        %v420 = vunpack.c.l.b16 %v351
        %v421 = vunpack.c.l.b16 %v352
        %v422 = vunpack.c.h.b16 %v352
        %v423 = vunpack.c.l.b16 %v353
        %v424 = vunpack.c.l.b16 %v354
        %v425 = vunpack.c.h.b16 %v354
        %v426 = vunpack.c.l.b16 %v355
        %v427 = vunpack.c.l.b16 %v356
        %v428 = vunpack.c.h.b16 %v356
        %v429 = vunpack.c.l.b16 %v357
        %v430 = vunpack.c.l.b16 %v358
        %v431 = vunpack.c.h.b16 %v358
        %v432 = vunpack.c.l.b16 %v359
        %v433 = vunpack.c.l.b16 %v360
        %v434 = vunpack.c.h.b16 %v360
        %v435 = vunpack.c.l.b16 %v361
        %v436 = vunpack.c.l.b16 %v362
        %v437 = vunpack.c.h.b16 %v362
        %v438 = vunpack.c.l.b16 %v363
        %v439 = vunpack.c.l.b16 %v364
        %v440 = vunpack.c.h.b16 %v364
        %v441 = vunpack.c.l.b16 %v365
        %v442 = vunpack.c.l.b16 %v366
        %v443 = vunpack.c.h.b16 %v366
        %v444 = vunpack.c.l.b16 %v367
        %v445 = vunpack.c.l.b16 %v368
        %v446 = vunpack.c.h.b16 %v368
        %v447 = vunpack.c.l.b16 %v369
        %v448 = vunpack.c.l.b16 %v370
        %v449 = vunpack.c.h.b16 %v370
        %v450 = vunpack.c.l.b16 %v371
        %v451 = vunpack.c.l.b16 %v372
        %v452 = vunpack.c.h.b16 %v372
        %v453 = vunpack.c.l.b16 %v373
        %v454 = vpack.c.b16 %v409, %v406
        %v455 = vpack.c.b16 %v410, %v407
        %v456 = vpack.c.b16 %v411, %v408
        %v457 = vpack.c.b16 %v415, %v412
        %v458 = vpack.c.b16 %v416, %v413
        %v459 = vpack.c.b16 %v417, %v414
        %v460 = vpack.c.b16 %v421, %v418
        %v461 = vpack.c.b16 %v422, %v419
        %v462 = vpack.c.b16 %v423, %v420
        %v463 = vpack.c.b16 %v427, %v424
        %v464 = vpack.c.b16 %v428, %v425
        %v465 = vpack.c.b16 %v429, %v426
        %v466 = vpack.c.b16 %v433, %v430
        %v467 = vpack.c.b16 %v434, %v431
        %v468 = vpack.c.b16 %v435, %v432
        %v469 = vpack.c.b16 %v439, %v436
        %v470 = vpack.c.b16 %v440, %v437
        %v471 = vpack.c.b16 %v441, %v438
        %v472 = vpack.c.b16 %v445, %v442
        %v473 = vpack.c.b16 %v446, %v443
        %v474 = vpack.c.b16 %v447, %v444
        %v475 = vpack.c.b16 %v451, %v448
        %v476 = vpack.c.b16 %v452, %v449
        %v477 = vpack.c.b16 %v453, %v450
        %502 = vmatprep.subr.bf16.mxu0 %v455
        %503 = vmatpush1.bf16.msra.mxu0 %v454
        %504 = vmatprep.subr.bf16.mxu0 %v458
        %505 = vmatpush1.bf16.msra.mxu0 %v457
        %506 = vmatprep.subr.bf16.mxu0 %v461
        %507 = vmatpush1.bf16.msra.mxu0 %v460
        %508 = vmatprep.subr.bf16.mxu0 %v464
        %509 = vmatpush1.bf16.msra.mxu0 %v463
        %510 = vmatprep.subr.bf16.mxu0 %v467
        %511 = vmatpush1.bf16.msra.mxu0 %v466
        %512 = vmatprep.subr.bf16.mxu0 %v470
        %513 = vmatpush1.bf16.msra.mxu0 %v469
        %514 = vmatprep.subr.bf16.mxu0 %v473
        %515 = vmatpush1.bf16.msra.mxu0 %v472
        %516 = vmatprep.subr.bf16.mxu0 %v476
        %517 = vmatpush1.bf16.msra.mxu0 %v475
        %518 = vmatprep.subr.bf16.mxu0 0
        %519 = vmatpush1.bf16.msra.mxu0 0
        %520 = vmatprep.subr.bf16.mxu0 0
        %521 = vmatpush1.bf16.msra.mxu0 0
        %522 = vmatprep.subr.bf16.mxu0 0
        %523 = vmatpush1.bf16.msra.mxu0 0
        %524 = vmatprep.subr.bf16.mxu0 0
        %525 = vmatpush1.bf16.msra.mxu0 0
        %526 = vmatprep.subr.bf16.mxu0 0
        %527 = vmatpush1.bf16.msra.mxu0 0
        %528 = vmatprep.subr.bf16.mxu0 0
        %529 = vmatpush1.bf16.msra.mxu0 0
        %530 = vmatprep.subr.bf16.mxu0 0
        %531 = vmatpush1.bf16.msra.mxu0 0
        %532 = vmatprep.subr.bf16.mxu0 0
        %533 = vmatpush1.bf16.msra.mxu0 0
        %534 = vmatprep.mubr.bf16.mxu0 0
        %535 = vmatmul.mubr.bf16.gmra.mrb[0].mxu0 %v341
        %v536 = vpop.f32.mrb[0].mxu0
        %v537 = vadd.f32 0.0, %v536
        %v538 = vpop.f32.mrb[0].mxu0
        %v539 = vadd.f32 0.0, %v538
        %v540 = vpop.f32.mrb[0].mxu0
        %v541 = vadd.f32 0.0, %v540
        %v542 = vpop.f32.mrb[0].mxu0
        %v543 = vadd.f32 0.0, %v542
        %544 = vdwg.mxu0
        %545 = vmatprep.subr.bf16.mxu0 0
        %546 = vmatpush1.bf16.msra.mxu0 %v456
        %547 = vmatprep.subr.bf16.mxu0 0
        %548 = vmatpush1.bf16.msra.mxu0 %v459
        %549 = vmatprep.subr.bf16.mxu0 0
        %550 = vmatpush1.bf16.msra.mxu0 %v462
        %551 = vmatprep.subr.bf16.mxu0 0
        %552 = vmatpush1.bf16.msra.mxu0 %v465
        %553 = vmatprep.subr.bf16.mxu0 0
        %554 = vmatpush1.bf16.msra.mxu0 %v468
        %555 = vmatprep.subr.bf16.mxu0 0
        %556 = vmatpush1.bf16.msra.mxu0 %v471
        %557 = vmatprep.subr.bf16.mxu0 0
        %558 = vmatpush1.bf16.msra.mxu0 %v474
        %559 = vmatprep.subr.bf16.mxu0 0
        %560 = vmatpush1.bf16.msra.mxu0 %v477
        %561 = vmatprep.subr.bf16.mxu0 0
        %562 = vmatpush1.bf16.msra.mxu0 0
        %563 = vmatprep.subr.bf16.mxu0 0
        %564 = vmatpush1.bf16.msra.mxu0 0
        %565 = vmatprep.subr.bf16.mxu0 0
        %566 = vmatpush1.bf16.msra.mxu0 0
        %567 = vmatprep.subr.bf16.mxu0 0
        %568 = vmatpush1.bf16.msra.mxu0 0
        %569 = vmatprep.subr.bf16.mxu0 0
        %570 = vmatpush1.bf16.msra.mxu0 0
        %571 = vmatprep.subr.bf16.mxu0 0
        %572 = vmatpush1.bf16.msra.mxu0 0
        %573 = vmatprep.subr.bf16.mxu0 0
        %574 = vmatpush1.bf16.msra.mxu0 0
        %575 = vmatprep.subr.bf16.mxu0 0
        %576 = vmatpush1.bf16.msra.mxu0 0
        %577 = vmatprep.mubr.bf16.mxu0 0
        %578 = vmatmul.mubr.bf16.gmra.mrb[0].mxu0 %v341
        %v579 = vpop.f32.mrb[0].mxu0
        %v580 = vadd.f32 0.0, %v579
        %v581 = vpop.f32.mrb[0].mxu0
        %v582 = vpop.f32.mrb[0].mxu0
        %v583 = vadd.f32 0.0, %v582
        %v584 = vpop.f32.mrb[0].mxu0
        %585 = vdwg.mxu0
        %v586 = vmul.f32 %v537, 0.25
        %v587 = vmul.f32 %v541, 0.25
        %v588 = vpack.c.bf16 %v587, %v586
        %v590 = vunpack.c.l.b16 %v588
        %v591 = vunpack.c.h.b16 %v588
        %v592 = vpack.c.b16 %v590, %v590
        %v593 = vpack.c.b16 %v591, %v591
        %596 = vst [vmem:[%s295] sm:$0xf] %v592
        %597 = vst [vmem:[%s295 + $0x4] sm:$0xf] %v593
        %598 = vst [vmem:[%s302] sm:$0xff] %v539
        %599 = vst [vmem:[%s302 + $0x8] sm:$0xff] %v543
        %600 = vst [vmem:[%s309] sm:$0xff] %v580
        %601 = vst [vmem:[%s309 + $0x8] sm:$0xff] %v583
        %s602 = sand.u32 %s119, 1
        %s603 = scalar_lea.sflag [#allocation4], %s602
        %s604 = sand.u32 %s119, 1
        %s605 = smul.addr %s604, 8
        %s606 = scalar_lea.vmem [#allocation8], %s605
        %s607 = sand.u32 %s27, 1
        %s608 = scalar_lea.sflag [#allocation10], %s607
        %s609 = sand.u32 %s147, 1
        %s610 = smul.addr %s609, 16
        %s611 = scalar_lea.vmem [#allocation9], %s610
        %s612 = sand.u32 %s27, 1
        %s613 = scalar_lea.sflag [#allocation10], %s612
        %s614 = sand.u32 %s175, 1
        %s615 = smul.addr %s614, 16
        %s616 = scalar_lea.vmem [#allocation11], %s615
        // Predicated region
        $region45: #{tpu_custom_call.1} parent=31 // pred_check
          %p617 = pneg %p129
        $region46: #{tpu_custom_call.1} parent=31 // pred_check_branch
          %619 = sbr.rel (%p617) target = $region48
        $region47: #{tpu_custom_call.1} parent=31 // pred_region
          %s620 = smul.u32 2, %s32
          %s622 = ssub.s32 128, 128
          %623 = vsyncadd %s603, %s622
          %s624 = smul.addr %s31, 2
          %s625 = sadd.s32 %s620, %s624
          %s626 = smul.addr %s625, 64
          %s627 = scalar_lea.hbm %s3, %s626
          %s628 = sshll.u32 %s606, 4
          %s629 = int_to_ptr.vmem [resolvable:$true] %s628
          %634 = dma.vmem_to_hbm [thread:$0]  %s629, 128, %s627, %s603, 64, 64, 4
        $region48: #{tpu_custom_call.1} parent=31 // pred_fallthru
          _
        // Predicated region
        $region49: #{tpu_custom_call.1} parent=31 // pred_check
          %p635 = pneg %p157
        $region50: #{tpu_custom_call.1} parent=31 // pred_check_branch
          %637 = sbr.rel (%p635) target = $region52
        $region51: #{tpu_custom_call.1} parent=31 // pred_region
          %s638 = smul.u32 2, %s32
          %s640 = ssub.s32 256, 256
          %641 = vsyncadd %s608, %s640
          %s642 = smul.addr %s31, 2
          %s643 = sadd.s32 %s638, %s642
          %s644 = smul.addr %s643, 128
          %s645 = scalar_lea.hbm %s4, %s644
          %s646 = sshll.u32 %s611, 4
          %s647 = int_to_ptr.vmem [resolvable:$true] %s646
          %652 = dma.vmem_to_hbm [thread:$0]  %s647, 256, %s645, %s608, 128, 128, 8
        $region52: #{tpu_custom_call.1} parent=31 // pred_fallthru
          _
        // Predicated region
        $region53: #{tpu_custom_call.1} parent=31 // pred_check
          %p653 = pneg %p185
        $region54: #{tpu_custom_call.1} parent=31 // pred_check_branch
          %655 = sbr.rel (%p653) target = $region56
        $region55: #{tpu_custom_call.1} parent=31 // pred_region
          %s656 = smul.u32 2, %s32
          %s658 = ssub.s32 256, 256
          %659 = vsyncadd %s613, %s658
          %s660 = smul.addr %s31, 2
          %s661 = sadd.s32 %s656, %s660
          %s662 = smul.addr %s661, 128
          %s663 = scalar_lea.hbm %s5, %s662
          %s664 = sshll.u32 %s616, 4
          %s665 = int_to_ptr.vmem [resolvable:$true] %s664
          %670 = dma.vmem_to_hbm [thread:$0]  %s665, 256, %s663, %s613, 128, 128, 8
        $region56: #{tpu_custom_call.1} parent=31 // pred_fallthru
          _
      $region32: #{tpu_custom_call.1} parent=5 // pred_fallthru
        _
      %p671 = scmp.le.s32.totalorder 2, %s22
      // Predicated region
      $region57: #{tpu_custom_call.1} parent=5 // pred_check
        %p672 = pneg %p671
      $region58: #{tpu_custom_call.1} parent=5 // pred_check_branch
        %674 = sbr.rel (%p672) target = $region60
      $region59: #{tpu_custom_call.1} parent=5 // pred_region
        %s675 = ssub.s32 %s22, 2
        // Predicated region
        $region61: #{tpu_custom_call.1} parent=59 // pred_check
          %p676 = pneg %p135
        $region62: #{tpu_custom_call.1} parent=59 // pred_check_branch
          %678 = sbr.rel (%p676) target = $region64
        $region63: #{tpu_custom_call.1} parent=59 // pred_region
          %s679 = sand.u32 %s120, 1
          %s680 = scalar_lea.sflag [#allocation4], %s679
          %s681 = sand.u32 %s120, 1
          %s682 = smul.addr %s681, 8
          %s683 = scalar_lea.vmem [#allocation8], %s682
          %684 = dma.done %s680, 128
        $region64: #{tpu_custom_call.1} parent=59 // pred_fallthru
          _
        // Predicated region
        $region65: #{tpu_custom_call.1} parent=59 // pred_check
          %p685 = pneg %p163
        $region66: #{tpu_custom_call.1} parent=59 // pred_check_branch
          %687 = sbr.rel (%p685) target = $region68
        $region67: #{tpu_custom_call.1} parent=59 // pred_region
          %s688 = sand.u32 %s28, 1
          %s689 = scalar_lea.sflag [#allocation10], %s688
          %s690 = sand.u32 %s148, 1
          %s691 = smul.addr %s690, 16
          %s692 = scalar_lea.vmem [#allocation9], %s691
          %693 = dma.done %s689, 256
        $region68: #{tpu_custom_call.1} parent=59 // pred_fallthru
          _
        // Predicated region
        $region69: #{tpu_custom_call.1} parent=59 // pred_check
          %p694 = pneg %p191
        $region70: #{tpu_custom_call.1} parent=59 // pred_check_branch
          %696 = sbr.rel (%p694) target = $region72
        $region71: #{tpu_custom_call.1} parent=59 // pred_region
          %s697 = sand.u32 %s28, 1
          %s698 = scalar_lea.sflag [#allocation10], %s697
          %s699 = sand.u32 %s176, 1
          %s700 = smul.addr %s699, 16
          %s701 = scalar_lea.vmem [#allocation11], %s700
          %702 = dma.done %s698, 256
        $region72: #{tpu_custom_call.1} parent=59 // pred_fallthru
          _
      $region60: #{tpu_custom_call.1} parent=5 // pred_fallthru
        _
    $region6: #{tpu_custom_call.1} parent=1 // loop_footer
      %s26 = sadd.s32 1, %s22
    $region7: #{tpu_custom_call.1} parent=1 // loop_footer_branch
      %21 = sbr.rel target = $region3
    $region8: #{tpu_custom_call.1} parent=1 // loop_exit
      _
    %703 = vsyncpa [#allocation3], 1
    %s704 = scalar_lea.sflag [#allocation3], 1
    %705 = vsyncpa %s704, 1
    %706 = vsyncpa [#allocation6], 1
    %707 = vsyncpa [#allocation4], 1
    %s708 = scalar_lea.sflag [#allocation4], 1
    %709 = vsyncpa %s708, 1
    %710 = vsyncpa [#allocation10], 1
    %s711 = scalar_lea.sflag [#allocation10], 1
    %712 = vsyncpa %s711, 1

</llo_original>
